<compile_context>
chip_gen: v7x
topology: tpu7x:2x2x1
jax: 0.10.0
libtpu: 0.0.40
codegen_flags: <defaults>
</compile_context>

<pallas_src>
import functools

import jax
import jax.numpy as jnp
from jax.experimental import pallas as pl
from jax.experimental.pallas import tpu as pltpu


def _round_up(x, m):
    return ((x + m - 1) // m) * m


# Probe once whether this JAX build supports single-buffering via pipeline_mode.
_RESIDENT_KW = {}
if hasattr(pl, "Buffered"):
    try:
        pl.BlockSpec((8, 128), lambda i: (0, 0), pipeline_mode=pl.Buffered(1))
        _RESIDENT_KW = {"pipeline_mode": pl.Buffered(1)}
    except Exception:  # pragma: no cover - older API, fall back to default buffering
        _RESIDENT_KW = {}


def _ffn_kernel(x_ref, w1_ref, b1_ref, w2_ref, b2_ref, o_ref):
    # x_ref:  (TM, d_model)  bf16      w1_ref: (d_model, d_ff) bf16
    # b1_ref: (1, d_ff)      f32       w2_ref: (d_ff, d_model) bf16
    # b2_ref: (1, d_model)   f32       o_ref:  (TM, d_model)   f32
    h = jnp.dot(x_ref[...], w1_ref[...], preferred_element_type=jnp.float32)
    h = jnp.maximum(h + b1_ref[...], 0.0)  # bias add + ReLU in f32 on the VPU
    # TODO(synk): dropout only matters in training; inference-mode dropout is identity.
    y = jnp.dot(h.astype(jnp.bfloat16), w2_ref[...],
                preferred_element_type=jnp.float32)
    o_ref[...] = (y + b2_ref[...]).astype(o_ref.dtype)


@functools.partial(jax.jit, static_argnames=("tile_m",))
def position_wise_ffn(x, w1, b1, w2, b2, *, tile_m=256):
    """x: [B, S, d_model]; w1: [d_model, d_ff]; b1: [d_ff]; w2: [d_ff, d_model]; b2: [d_model]."""
    B, S, d_model = x.shape
    d_ff = w1.shape[1]
    rows = B * S

    # Pick the largest MXU-friendly row tile that the problem supports and pad
    # the row count up to a multiple of it (padded rows are discarded below).
    tile = min(tile_m, _round_up(rows, 8))
    rows_padded = _round_up(rows, tile)

    x2d = x.reshape(rows, d_model).astype(jnp.bfloat16)
    if rows_padded != rows:
        x2d = jnp.pad(x2d, ((0, rows_padded - rows), (0, 0)))

    w1b = w1.astype(jnp.bfloat16)
    w2b = w2.astype(jnp.bfloat16)
    b1_2d = b1.reshape(1, d_ff).astype(jnp.float32)
    b2_2d = b2.reshape(1, d_model).astype(jnp.float32)

    out2d = pl.pallas_call(
        _ffn_kernel,
        out_shape=jax.ShapeDtypeStruct((rows_padded, d_model), jnp.float32),
        grid_spec=pltpu.PrefetchScalarGridSpec(
            num_scalar_prefetch=0,
            grid=(rows_padded // tile,),
            in_specs=[
                pl.BlockSpec((tile, d_model), lambda i: (i, 0)),                # x rows tile
                pl.BlockSpec((d_model, d_ff), lambda i: (0, 0), **_RESIDENT_KW),  # W1 (resident)
                pl.BlockSpec((1, d_ff), lambda i: (0, 0), **_RESIDENT_KW),        # b1
                pl.BlockSpec((d_ff, d_model), lambda i: (0, 0), **_RESIDENT_KW),  # W2 (resident)
                pl.BlockSpec((1, d_model), lambda i: (0, 0), **_RESIDENT_KW),     # b2
            ],
            out_specs=pl.BlockSpec((tile, d_model), lambda i: (i, 0)),
        ),
        compiler_params=pltpu.CompilerParams(
            dimension_semantics=("parallel",),      # rows shard across TCs (v7x megacore)
            vmem_limit_bytes=64 * 1024 * 1024,      # budgeted for v7x's 64 MiB VMEM
        ),
    )(x2d, w1b, b1_2d, w2b, b2_2d)

    out2d = out2d[:rows].astype(x.dtype)
    return out2d.reshape(B, S, d_model)


if __name__ == "__main__":
    # Small shapes consistent with the module's forward: [batch, seq, d_model].
    # d_model/d_ff kept as multiples of 128 (lane-dense); S chosen so that
    # rows = B*S is NOT a multiple of 8, exercising the padding path.
    B, S, d_model, d_ff = 2, 10, 128, 256
    key = jax.random.PRNGKey(0)
    kx, kw1, kb1, kw2, kb2 = jax.random.split(key, 5)

    x = jax.random.normal(kx, (B, S, d_model), dtype=jnp.float32)
    # Deterministic parameter init (synthetic; mimics nn.Linear's uniform scale).
    lim1 = 1.0 / (d_model ** 0.5)
    lim2 = 1.0 / (d_ff ** 0.5)
    w1 = jax.random.uniform(kw1, (d_model, d_ff), jnp.float32, -lim1, lim1)
    b1 = jax.random.uniform(kb1, (d_ff,), jnp.float32, -lim1, lim1)
    w2 = jax.random.uniform(kw2, (d_ff, d_model), jnp.float32, -lim2, lim2)
    b2 = jax.random.uniform(kb2, (d_model,), jnp.float32, -lim2, lim2)

    out = position_wise_ffn(x, w1, b1, w2, b2)
    out = jax.block_until_ready(out)
    assert out.shape == (B, S, d_model)

    # Pure-JAX reference using the same bf16-inputs / f32-accumulate recipe.
    xb = x.reshape(-1, d_model).astype(jnp.bfloat16)
    h_ref = jnp.maximum(
        jnp.dot(xb, w1.astype(jnp.bfloat16), preferred_element_type=jnp.float32) + b1, 0.0)
    ref = (jnp.dot(h_ref.astype(jnp.bfloat16), w2.astype(jnp.bfloat16),
                   preferred_element_type=jnp.float32) + b2).reshape(B, S, d_model)
    assert jnp.allclose(out, ref, atol=1e-2, rtol=1e-2), \
        float(jnp.max(jnp.abs(out - ref)))

    print("KERNEL_OK")
</pallas_src>

<mosaic_0001>
module attributes {stable_mosaic.version = 11 : i64} {
  func.func @_ffn_kernel(%arg0: i32, %arg1: memref<24x128xbf16, #tpu.memory_space<vmem>>, %arg2: memref<128x256xbf16, #tpu.memory_space<vmem>>, %arg3: memref<1x256xf32, #tpu.memory_space<vmem>>, %arg4: memref<256x128xbf16, #tpu.memory_space<vmem>>, %arg5: memref<1x128xf32, #tpu.memory_space<vmem>>, %arg6: memref<24x128xf32, #tpu.memory_space<vmem>>) attributes {dimension_semantics = [#tpu.dimension_semantics<parallel>], iteration_bounds = array<i64: 1>, scalar_prefetch = 0 : i64, scratch_operands = 0 : i64, tpu.core_type = #tpu.core_type<tc>, window_params = [{transform_indices = @transform_0, window_bounds = array<i64: 24, 128>}, {pipeline_mode = #tpu.pipeline_mode<synchronous>, transform_indices = @transform_1, window_bounds = array<i64: 128, 256>}, {pipeline_mode = #tpu.pipeline_mode<synchronous>, transform_indices = @transform_2, window_bounds = array<i64: 1, 256>}, {pipeline_mode = #tpu.pipeline_mode<synchronous>, transform_indices = @transform_3, window_bounds = array<i64: 256, 128>}, {pipeline_mode = #tpu.pipeline_mode<synchronous>, transform_indices = @transform_4, window_bounds = array<i64: 1, 128>}, {transform_indices = @transform_5, window_bounds = array<i64: 24, 128>}]} {
    %c0 = arith.constant 0 : index
    %c0_0 = arith.constant 0 : index
    %0 = vector.load %arg1[%c0, %c0_0] : memref<24x128xbf16, #tpu.memory_space<vmem>>, vector<24x128xbf16>
    %c0_1 = arith.constant 0 : index
    %c0_2 = arith.constant 0 : index
    %1 = vector.load %arg2[%c0_1, %c0_2] : memref<128x256xbf16, #tpu.memory_space<vmem>>, vector<128x256xbf16>
    %cst = arith.constant dense<0.000000e+00> : vector<24x256xf32>
    %2 = tpu.matmul %0, %1, %cst {dimension_numbers = #tpu.dot_dimension_numbers<[1], [0], [0], [1], [0, 0, 1, 1], [], []>} : vector<24x128xbf16>, vector<128x256xbf16>, vector<24x256xf32> -> vector<24x256xf32>
    %c0_3 = arith.constant 0 : index
    %c0_4 = arith.constant 0 : index
    %3 = vector.load %arg3[%c0_3, %c0_4] : memref<1x256xf32, #tpu.memory_space<vmem>>, vector<1x256xf32>
    %4 = vector.broadcast %3 : vector<1x256xf32> to vector<24x256xf32>
    %5 = arith.addf %2, %4 : vector<24x256xf32>
    %cst_5 = arith.constant 0.000000e+00 : f32
    %6 = vector.broadcast %cst_5 : f32 to vector<24x256xf32>
    %7 = arith.maximumf %5, %6 : vector<24x256xf32>
    %8 = arith.truncf %7 : vector<24x256xf32> to vector<24x256xbf16>
    %c0_6 = arith.constant 0 : index
    %c0_7 = arith.constant 0 : index
    %9 = vector.load %arg4[%c0_6, %c0_7] : memref<256x128xbf16, #tpu.memory_space<vmem>>, vector<256x128xbf16>
    %cst_8 = arith.constant dense<0.000000e+00> : vector<24x128xf32>
    %10 = tpu.matmul %8, %9, %cst_8 {dimension_numbers = #tpu.dot_dimension_numbers<[1], [0], [0], [1], [0, 0, 1, 1], [], []>} : vector<24x256xbf16>, vector<256x128xbf16>, vector<24x128xf32> -> vector<24x128xf32>
    %c0_9 = arith.constant 0 : index
    %c0_10 = arith.constant 0 : index
    %11 = vector.load %arg5[%c0_9, %c0_10] : memref<1x128xf32, #tpu.memory_space<vmem>>, vector<1x128xf32>
    %12 = vector.broadcast %11 : vector<1x128xf32> to vector<24x128xf32>
    %13 = arith.addf %10, %12 : vector<24x128xf32>
    %c0_11 = arith.constant 0 : index
    %c0_12 = arith.constant 0 : index
    %14 = vector.load %arg6[%c0_11, %c0_12] : memref<24x128xf32, #tpu.memory_space<vmem>>, vector<24x128xf32>
    tpu.vector_store %arg6[%c0_11, %c0_12], %13 {strides = array<i32>} : memref<24x128xf32, #tpu.memory_space<vmem>>, vector<24x128xf32>,
    return
  }
  func.func @transform_0(%arg0: i32) -> (i32, i32) {
    %c0_i32 = arith.constant 0 : i32
    %c0_i32_0 = arith.constant 0 : i32
    return %arg0, %c0_i32 : i32, i32
  }
  func.func @transform_1(%arg0: i32) -> (i32, i32) {
    %c0_i32 = arith.constant 0 : i32
    %c0_i32_0 = arith.constant 0 : i32
    %c0_i32_1 = arith.constant 0 : i32
    return %c0_i32, %c0_i32_0 : i32, i32
  }
  func.func @transform_2(%arg0: i32) -> (i32, i32) {
    %c0_i32 = arith.constant 0 : i32
    %c0_i32_0 = arith.constant 0 : i32
    %c0_i32_1 = arith.constant 0 : i32
    return %c0_i32, %c0_i32_0 : i32, i32
  }
  func.func @transform_3(%arg0: i32) -> (i32, i32) {
    %c0_i32 = arith.constant 0 : i32
    %c0_i32_0 = arith.constant 0 : i32
    %c0_i32_1 = arith.constant 0 : i32
    return %c0_i32, %c0_i32_0 : i32, i32
  }
  func.func @transform_4(%arg0: i32) -> (i32, i32) {
    %c0_i32 = arith.constant 0 : i32
    %c0_i32_0 = arith.constant 0 : i32
    %c0_i32_1 = arith.constant 0 : i32
    return %c0_i32, %c0_i32_0 : i32, i32
  }
  func.func @transform_5(%arg0: i32) -> (i32, i32) {
    %c0_i32 = arith.constant 0 : i32
    %c0_i32_0 = arith.constant 0 : i32
    return %arg0, %c0_i32 : i32, i32
  }
}

</mosaic_0001>

<llo_original>
// kernel: position_wise_ffn.1
$region0: #{position_wise_ffn.1}
  #allocation0 [shape = 'u32[]', space=smem, size = 0x4, offset = 0x4, fixed_abs, tag = 'smem constant byte address 0x4 - core index']
  #allocation1 [shape = 'u32[144,128]{1,0:T(1,128)}', space=vmem, size = 0x12000, scoped, tag = 'internal scratch']
  %s0 = inlined_call_operand.hbm [shape: bf16[24,128], index: 0, kind: input, shape index: {}]
  %s1 = inlined_call_operand.hbm [shape: bf16[128,256], index: 1, kind: input, shape index: {}]
  %s2 = inlined_call_operand.hbm [shape: f32[1,256], index: 2, kind: input, shape index: {}]
  %s3 = inlined_call_operand.hbm [shape: bf16[256,128], index: 3, kind: input, shape index: {}]
  %s4 = inlined_call_operand.hbm [shape: f32[1,128], index: 4, kind: input, shape index: {}]
  %s5 = inlined_call_operand.hbm [shape: f32[24,128], index: 5, kind: output, shape index: {}]
  %s6 = sld [smem:[#allocation0]]
  $region50: #{position_wise_ffn.1} parent=0
    _
  %s8 = ssub.s32 1, %s6
  %s9 = scalar_select 0, %s8, %s6
  $region1: #{position_wise_ffn.1} parent=0
    #allocation2 [shape = 'u8[6144]{0}', space=vmem, size = 0x1800, scoped, tag = 'input window, operand 0, single buffered']
    #allocation3 [shape = 's32[1]{0}', space=sflag, size = 0x4, scoped, tag = 'scoped memory for position_wise_ffn.1']
    #allocation4 [shape = 's32[1]{0}', space=sflag, size = 0x4, scoped, tag = 'scoped memory for position_wise_ffn.1']
    #allocation5 [shape = 'u8[65536]{0}', space=vmem, size = 0x10000, scoped, tag = 'input window, operand 1, single buffered']
    #allocation6 [shape = 's32[1]{0}', space=sflag, size = 0x4, scoped, tag = 'scoped memory for position_wise_ffn.1']
    #allocation7 [shape = 'u8[1024]{0}', space=vmem, size = 0x400, scoped, tag = 'input window, operand 2, single buffered']
    #allocation8 [shape = 'u8[65536]{0}', space=vmem, size = 0x10000, scoped, tag = 'input window, operand 3, single buffered']
    #allocation9 [shape = 's32[1]{0}', space=sflag, size = 0x4, scoped, tag = 'scoped memory for position_wise_ffn.1']
    #allocation10 [shape = 'u8[512]{0}', space=vmem, size = 0x400, scoped, tag = 'input window, operand 4, single buffered']
    #allocation11 [shape = 'u8[12288]{0}', space=vmem, size = 0x3000, scoped, tag = 'output window, operand 0, single buffered']
    %10 = vsyncpa [#allocation3], 0
    %11 = vsyncpa [#allocation6], 0
    %12 = vsyncpa [#allocation9], 0
    %13 = vsyncpa [#allocation4], 0
    // Predicated region
    $region2: #{position_wise_ffn.1} parent=1 // pred_check
      _
    $region3: #{position_wise_ffn.1} parent=1 // pred_check_branch
      %15 = sbr.rel (0) target = $region5
    $region4: #{position_wise_ffn.1} parent=1 // pred_region
      %s17 = ssub.s32 192, 192
      %18 = vsyncadd [#allocation3], %s17
      %s19 = sshll.u32 [#allocation2], 4
      %s20 = int_to_ptr.vmem [resolvable:$true] %s19
      %25 = dma.hbm_to_vmem [thread:$0]  %s0, 192, %s20, [#allocation3], 64, 64, 4
    $region5: #{position_wise_ffn.1} parent=1 // pred_fallthru
      _
    // Predicated region
    $region6: #{position_wise_ffn.1} parent=1 // pred_check
      _
    $region7: #{position_wise_ffn.1} parent=1 // pred_check_branch
      %27 = sbr.rel (0) target = $region9
    $region8: #{position_wise_ffn.1} parent=1 // pred_region
      %s29 = ssub.s32 2048, 2048
      %30 = vsyncadd [#allocation6], %s29
      %s31 = sshll.u32 [#allocation5], 4
      %s32 = int_to_ptr.vmem [resolvable:$true] %s31
      %37 = dma.hbm_to_vmem [thread:$0]  %s1, 2048, %s32, [#allocation6], 128, 128, 8
    $region9: #{position_wise_ffn.1} parent=1 // pred_fallthru
      _
    // Predicated region
    $region10: #{position_wise_ffn.1} parent=1 // pred_check
      _
    $region11: #{position_wise_ffn.1} parent=1 // pred_check_branch
      %39 = sbr.rel (0) target = $region13
    $region12: #{position_wise_ffn.1} parent=1 // pred_region
      %s41 = ssub.s32 32, 32
      %42 = vsyncadd [#allocation6], %s41
      %s44 = sshll.u32 [#allocation7], 4
      %s45 = int_to_ptr.vmem [resolvable:$true] %s44
      %47 = dma.hbm_to_vmem [thread:$0]  %s2, 32, %s45, [#allocation6]
    $region13: #{position_wise_ffn.1} parent=1 // pred_fallthru
      _
    // Predicated region
    $region14: #{position_wise_ffn.1} parent=1 // pred_check
      _
    $region15: #{position_wise_ffn.1} parent=1 // pred_check_branch
      %49 = sbr.rel (0) target = $region17
    $region16: #{position_wise_ffn.1} parent=1 // pred_region
      %s51 = ssub.s32 2048, 2048
      %52 = vsyncadd [#allocation9], %s51
      %s53 = sshll.u32 [#allocation8], 4
      %s54 = int_to_ptr.vmem [resolvable:$true] %s53
      %59 = dma.hbm_to_vmem [thread:$0]  %s3, 2048, %s54, [#allocation9], 64, 64, 4
    $region17: #{position_wise_ffn.1} parent=1 // pred_fallthru
      _
    // Predicated region
    $region18: #{position_wise_ffn.1} parent=1 // pred_check
      _
    $region19: #{position_wise_ffn.1} parent=1 // pred_check_branch
      %61 = sbr.rel (0) target = $region21
    $region20: #{position_wise_ffn.1} parent=1 // pred_region
      %s63 = ssub.s32 16, 16
      %64 = vsyncadd [#allocation9], %s63
      %s66 = sshll.u32 [#allocation10], 4
      %s67 = int_to_ptr.vmem [resolvable:$true] %s66
      %69 = dma.hbm_to_vmem [thread:$0]  %s4, 16, %s67, [#allocation9]
    $region21: #{position_wise_ffn.1} parent=1 // pred_fallthru
      _
    // Predicated region
    $region22: #{position_wise_ffn.1} parent=1 // pred_check
      _
    $region23: #{position_wise_ffn.1} parent=1 // pred_check_branch
      %71 = sbr.rel (0) target = $region25
    $region24: #{position_wise_ffn.1} parent=1 // pred_region
      %72 = dma.done [#allocation3], 192
    $region25: #{position_wise_ffn.1} parent=1 // pred_fallthru
      _
    // Predicated region
    $region26: #{position_wise_ffn.1} parent=1 // pred_check
      _
    $region27: #{position_wise_ffn.1} parent=1 // pred_check_branch
      %74 = sbr.rel (0) target = $region29
    $region28: #{position_wise_ffn.1} parent=1 // pred_region
      %75 = dma.done [#allocation6], 2048
    $region29: #{position_wise_ffn.1} parent=1 // pred_fallthru
      _
    // Predicated region
    $region30: #{position_wise_ffn.1} parent=1 // pred_check
      _
    $region31: #{position_wise_ffn.1} parent=1 // pred_check_branch
      %77 = sbr.rel (0) target = $region33
    $region32: #{position_wise_ffn.1} parent=1 // pred_region
      %78 = dma.done [#allocation6], 32
    $region33: #{position_wise_ffn.1} parent=1 // pred_fallthru
      _
    // Predicated region
    $region34: #{position_wise_ffn.1} parent=1 // pred_check
      _
    $region35: #{position_wise_ffn.1} parent=1 // pred_check_branch
      %80 = sbr.rel (0) target = $region37
    $region36: #{position_wise_ffn.1} parent=1 // pred_region
      %81 = dma.done [#allocation9], 2048
    $region37: #{position_wise_ffn.1} parent=1 // pred_fallthru
      _
    // Predicated region
    $region38: #{position_wise_ffn.1} parent=1 // pred_check
      _
    $region39: #{position_wise_ffn.1} parent=1 // pred_check_branch
      %83 = sbr.rel (0) target = $region41
    $region40: #{position_wise_ffn.1} parent=1 // pred_region
      %84 = dma.done [#allocation9], 16
    $region41: #{position_wise_ffn.1} parent=1 // pred_fallthru
      _
    %v86 = vld [vmem:[#allocation2] sm:$0xf]
    %v87 = vld [vmem:[#allocation2 + $0x4] sm:$0xf]
    %v88 = vld [vmem:[#allocation2 + $0x8] sm:$0xf]
    %v89 = vld [vmem:[#allocation5] sm:$0xff]
    %v90 = vld [vmem:[#allocation5 + $0x8] sm:$0xff]
    %v91 = vld [vmem:[#allocation5 + $0x10] sm:$0xff]
    %v92 = vld [vmem:[#allocation5 + $0x18] sm:$0xff]
    %v93 = vld [vmem:[#allocation5 + $0x20] sm:$0xff]
    %v94 = vld [vmem:[#allocation5 + $0x28] sm:$0xff]
    %v95 = vld [vmem:[#allocation5 + $0x30] sm:$0xff]
    %v96 = vld [vmem:[#allocation5 + $0x38] sm:$0xff]
    %v97 = vld [vmem:[#allocation5 + $0x40] sm:$0xff]
    %v98 = vld [vmem:[#allocation5 + $0x48] sm:$0xff]
    %v99 = vld [vmem:[#allocation5 + $0x50] sm:$0xff]
    %v100 = vld [vmem:[#allocation5 + $0x58] sm:$0xff]
    %v101 = vld [vmem:[#allocation5 + $0x60] sm:$0xff]
    %v102 = vld [vmem:[#allocation5 + $0x68] sm:$0xff]
    %v103 = vld [vmem:[#allocation5 + $0x70] sm:$0xff]
    %v104 = vld [vmem:[#allocation5 + $0x78] sm:$0xff]
    %v105 = vld [vmem:[#allocation7] sm:$0x3]
    %v107 = vlaneseq
    %v108 = vshrl.u32 %v107, 7
    %v109 = vsub.s32 0, %v108
    %v110 = vrot.slane %v105, %v109
    %v111 = vlaneseq
    %v112 = vshrl.u32 %v111, 7
    %v113 = vsub.s32 1, %v112
    %v114 = vrot.slane %v105, %v113
    %v120 = vunpack.c.l.b16 %v86
    %v121 = vunpack.c.l.b16 %v87
    %v122 = vunpack.c.l.b16 %v88
    %v123 = vpack.c.b16 %v121, %v120
    %v124 = vpack.c.b16 %v122, %v122
    %v143 = vunpack.c.l.b16 %v89
    %v144 = vunpack.c.h.b16 %v89
    %v145 = vunpack.c.l.b16 %v90
    %v146 = vunpack.c.h.b16 %v90
    %v147 = vunpack.c.l.b16 %v91
    %v148 = vunpack.c.h.b16 %v91
    %v149 = vunpack.c.l.b16 %v92
    %v150 = vunpack.c.h.b16 %v92
    %v151 = vunpack.c.l.b16 %v93
    %v152 = vunpack.c.h.b16 %v93
    %v153 = vunpack.c.l.b16 %v94
    %v154 = vunpack.c.h.b16 %v94
    %v155 = vunpack.c.l.b16 %v95
    %v156 = vunpack.c.h.b16 %v95
    %v157 = vunpack.c.l.b16 %v96
    %v158 = vunpack.c.h.b16 %v96
    %v159 = vunpack.c.l.b16 %v97
    %v160 = vunpack.c.h.b16 %v97
    %v161 = vunpack.c.l.b16 %v98
    %v162 = vunpack.c.h.b16 %v98
    %v163 = vunpack.c.l.b16 %v99
    %v164 = vunpack.c.h.b16 %v99
    %v165 = vunpack.c.l.b16 %v100
    %v166 = vunpack.c.h.b16 %v100
    %v167 = vunpack.c.l.b16 %v101
    %v168 = vunpack.c.h.b16 %v101
    %v169 = vunpack.c.l.b16 %v102
    %v170 = vunpack.c.h.b16 %v102
    %v171 = vunpack.c.l.b16 %v103
    %v172 = vunpack.c.h.b16 %v103
    %v173 = vunpack.c.l.b16 %v104
    %v174 = vunpack.c.h.b16 %v104
    %v175 = vpack.c.b16 %v145, %v143
    %v176 = vpack.c.b16 %v146, %v144
    %v177 = vpack.c.b16 %v149, %v147
    %v178 = vpack.c.b16 %v150, %v148
    %v179 = vpack.c.b16 %v153, %v151
    %v180 = vpack.c.b16 %v154, %v152
    %v181 = vpack.c.b16 %v157, %v155
    %v182 = vpack.c.b16 %v158, %v156
    %v183 = vpack.c.b16 %v161, %v159
    %v184 = vpack.c.b16 %v162, %v160
    %v185 = vpack.c.b16 %v165, %v163
    %v186 = vpack.c.b16 %v166, %v164
    %v187 = vpack.c.b16 %v169, %v167
    %v188 = vpack.c.b16 %v170, %v168
    %v189 = vpack.c.b16 %v173, %v171
    %v190 = vpack.c.b16 %v174, %v172
    %207 = vmatprep.subr.bf16.mxu0 %v176
    %208 = vmatpush1.bf16.msra.mxu0 %v175
    %209 = vmatprep.subr.bf16.mxu0 %v178
    %210 = vmatpush1.bf16.msra.mxu0 %v177
    %211 = vmatprep.subr.bf16.mxu0 %v180
    %212 = vmatpush1.bf16.msra.mxu0 %v179
    %213 = vmatprep.subr.bf16.mxu0 %v182
    %214 = vmatpush1.bf16.msra.mxu0 %v181
    %215 = vmatprep.subr.bf16.mxu0 %v184
    %216 = vmatpush1.bf16.msra.mxu0 %v183
    %217 = vmatprep.subr.bf16.mxu0 %v186
    %218 = vmatpush1.bf16.msra.mxu0 %v185
    %219 = vmatprep.subr.bf16.mxu0 %v188
    %220 = vmatpush1.bf16.msra.mxu0 %v187
    %221 = vmatprep.subr.bf16.mxu0 %v190
    %222 = vmatpush1.bf16.msra.mxu0 %v189
    %223 = vmatprep.subr.bf16.mxu0 0
    %224 = vmatpush1.bf16.msra.mxu0 0
    %225 = vmatprep.subr.bf16.mxu0 0
    %226 = vmatpush1.bf16.msra.mxu0 0
    %227 = vmatprep.subr.bf16.mxu0 0
    %228 = vmatpush1.bf16.msra.mxu0 0
    %229 = vmatprep.subr.bf16.mxu0 0
    %230 = vmatpush1.bf16.msra.mxu0 0
    %231 = vmatprep.subr.bf16.mxu0 0
    %232 = vmatpush1.bf16.msra.mxu0 0
    %233 = vmatprep.subr.bf16.mxu0 0
    %234 = vmatpush1.bf16.msra.mxu0 0
    %235 = vmatprep.subr.bf16.mxu0 0
    %236 = vmatpush1.bf16.msra.mxu0 0
    %237 = vmatprep.subr.bf16.mxu0 0
    %238 = vmatpush1.bf16.msra.mxu0 0
    %239 = vmatprep.mubr.bf16.mxu0 0
    %240 = vmatmul.mubr.bf16.gmra.mrb[0].mxu0 %v123
    %v241 = vpop.f32.mrb[0].mxu0
    %v242 = vadd.f32 %v110, %v241
    %v243 = vpop.f32.mrb[0].mxu0
    %v244 = vadd.f32 %v114, %v243
    %v245 = vpop.f32.mrb[0].mxu0
    %v246 = vadd.f32 %v110, %v245
    %v247 = vpop.f32.mrb[0].mxu0
    %v248 = vadd.f32 %v114, %v247
    %249 = vmatprep.mubr.bf16.mxu0 0
    %250 = vmatmul.mubr.bf16.gmra.mrb[0].mxu0 %v124
    %v251 = vpop.f32.mrb[0].mxu0
    %v252 = vadd.f32 %v110, %v251
    %v253 = vpop.f32.mrb[0].mxu0
    %v254 = vadd.f32 %v114, %v253
    %v255 = vpop.f32.mrb[0].mxu0
    %v256 = vpop.f32.mrb[0].mxu0
    %257 = vdwg.mxu0
    %v258 = vmax.f32 %v242, 0.0
    %v259 = vmax.f32 %v244, 0.0
    %v260 = vmax.f32 %v246, 0.0
    %v261 = vmax.f32 %v248, 0.0
    %v262 = vmax.f32 %v252, 0.0
    %v263 = vmax.f32 %v254, 0.0
    %v264 = vpack.c.bf16 %v260, %v258
    %v265 = vpack.c.bf16 %v261, %v259
    %v266 = vpack.c.bf16 %v262, %v262
    %v267 = vpack.c.bf16 %v263, %v263
    %v268 = vld [vmem:[#allocation8] sm:$0xf]
    %v269 = vld [vmem:[#allocation8 + $0x4] sm:$0xf]
    %v270 = vld [vmem:[#allocation8 + $0x8] sm:$0xf]
    %v271 = vld [vmem:[#allocation8 + $0xc] sm:$0xf]
    %v272 = vld [vmem:[#allocation8 + $0x10] sm:$0xf]
    %v273 = vld [vmem:[#allocation8 + $0x14] sm:$0xf]
    %v274 = vld [vmem:[#allocation8 + $0x18] sm:$0xf]
    %v275 = vld [vmem:[#allocation8 + $0x1c] sm:$0xf]
    %v276 = vld [vmem:[#allocation8 + $0x20] sm:$0xf]
    %v277 = vld [vmem:[#allocation8 + $0x24] sm:$0xf]
    %v278 = vld [vmem:[#allocation8 + $0x28] sm:$0xf]
    %v279 = vld [vmem:[#allocation8 + $0x2c] sm:$0xf]
    %v280 = vld [vmem:[#allocation8 + $0x30] sm:$0xf]
    %v281 = vld [vmem:[#allocation8 + $0x34] sm:$0xf]
    %v282 = vld [vmem:[#allocation8 + $0x38] sm:$0xf]
    %v283 = vld [vmem:[#allocation8 + $0x3c] sm:$0xf]
    %v284 = vld [vmem:[#allocation8 + $0x40] sm:$0xf]
    %v285 = vld [vmem:[#allocation8 + $0x44] sm:$0xf]
    %v286 = vld [vmem:[#allocation8 + $0x48] sm:$0xf]
    %v287 = vld [vmem:[#allocation8 + $0x4c] sm:$0xf]
    %v288 = vld [vmem:[#allocation8 + $0x50] sm:$0xf]
    %v289 = vld [vmem:[#allocation8 + $0x54] sm:$0xf]
    %v290 = vld [vmem:[#allocation8 + $0x58] sm:$0xf]
    %v291 = vld [vmem:[#allocation8 + $0x5c] sm:$0xf]
    %v292 = vld [vmem:[#allocation8 + $0x60] sm:$0xf]
    %v293 = vld [vmem:[#allocation8 + $0x64] sm:$0xf]
    %v294 = vld [vmem:[#allocation8 + $0x68] sm:$0xf]
    %v295 = vld [vmem:[#allocation8 + $0x6c] sm:$0xf]
    %v296 = vld [vmem:[#allocation8 + $0x70] sm:$0xf]
    %v297 = vld [vmem:[#allocation8 + $0x74] sm:$0xf]
    %v298 = vld [vmem:[#allocation8 + $0x78] sm:$0xf]
    %v299 = vld [vmem:[#allocation8 + $0x7c] sm:$0xf]
    %v300 = vld [vmem:[#allocation10] sm:$0x1]
    %v302 = vlaneseq
    %v303 = vshrl.u32 %v302, 7
    %v304 = vsub.s32 0, %v303
    %v305 = vrot.slane %v300, %v304
    %v339 = vunpack.c.l.b16 %v268
    %v340 = vunpack.c.l.b16 %v269
    %v341 = vunpack.c.l.b16 %v270
    %v342 = vunpack.c.l.b16 %v271
    %v343 = vunpack.c.l.b16 %v272
    %v344 = vunpack.c.l.b16 %v273
    %v345 = vunpack.c.l.b16 %v274
    %v346 = vunpack.c.l.b16 %v275
    %v347 = vunpack.c.l.b16 %v276
    %v348 = vunpack.c.l.b16 %v277
    %v349 = vunpack.c.l.b16 %v278
    %v350 = vunpack.c.l.b16 %v279
    %v351 = vunpack.c.l.b16 %v280
    %v352 = vunpack.c.l.b16 %v281
    %v353 = vunpack.c.l.b16 %v282
    %v354 = vunpack.c.l.b16 %v283
    %v355 = vunpack.c.l.b16 %v284
    %v356 = vunpack.c.l.b16 %v285
    %v357 = vunpack.c.l.b16 %v286
    %v358 = vunpack.c.l.b16 %v287
    %v359 = vunpack.c.l.b16 %v288
    %v360 = vunpack.c.l.b16 %v289
    %v361 = vunpack.c.l.b16 %v290
    %v362 = vunpack.c.l.b16 %v291
    %v363 = vunpack.c.l.b16 %v292
    %v364 = vunpack.c.l.b16 %v293
    %v365 = vunpack.c.l.b16 %v294
    %v366 = vunpack.c.l.b16 %v295
    %v367 = vunpack.c.l.b16 %v296
    %v368 = vunpack.c.l.b16 %v297
    %v369 = vunpack.c.l.b16 %v298
    %v370 = vunpack.c.l.b16 %v299
    %v371 = vpack.c.b16 %v340, %v339
    %v372 = vpack.c.b16 %v342, %v341
    %v373 = vpack.c.b16 %v344, %v343
    %v374 = vpack.c.b16 %v346, %v345
    %v375 = vpack.c.b16 %v348, %v347
    %v376 = vpack.c.b16 %v350, %v349
    %v377 = vpack.c.b16 %v352, %v351
    %v378 = vpack.c.b16 %v354, %v353
    %v379 = vpack.c.b16 %v356, %v355
    %v380 = vpack.c.b16 %v358, %v357
    %v381 = vpack.c.b16 %v360, %v359
    %v382 = vpack.c.b16 %v362, %v361
    %v383 = vpack.c.b16 %v364, %v363
    %v384 = vpack.c.b16 %v366, %v365
    %v385 = vpack.c.b16 %v368, %v367
    %v386 = vpack.c.b16 %v370, %v369
    %403 = vmatprep.subr.bf16.mxu0 0
    %404 = vmatpush1.bf16.msra.mxu0 %v371
    %405 = vmatprep.subr.bf16.mxu0 0
    %406 = vmatpush1.bf16.msra.mxu0 %v372
    %407 = vmatprep.subr.bf16.mxu0 0
    %408 = vmatpush1.bf16.msra.mxu0 %v373
    %409 = vmatprep.subr.bf16.mxu0 0
    %410 = vmatpush1.bf16.msra.mxu0 %v374
    %411 = vmatprep.subr.bf16.mxu0 0
    %412 = vmatpush1.bf16.msra.mxu0 %v375
    %413 = vmatprep.subr.bf16.mxu0 0
    %414 = vmatpush1.bf16.msra.mxu0 %v376
    %415 = vmatprep.subr.bf16.mxu0 0
    %416 = vmatpush1.bf16.msra.mxu0 %v377
    %417 = vmatprep.subr.bf16.mxu0 0
    %418 = vmatpush1.bf16.msra.mxu0 %v378
    %419 = vmatprep.subr.bf16.mxu0 0
    %420 = vmatpush1.bf16.msra.mxu0 %v379
    %421 = vmatprep.subr.bf16.mxu0 0
    %422 = vmatpush1.bf16.msra.mxu0 %v380
    %423 = vmatprep.subr.bf16.mxu0 0
    %424 = vmatpush1.bf16.msra.mxu0 %v381
    %425 = vmatprep.subr.bf16.mxu0 0
    %426 = vmatpush1.bf16.msra.mxu0 %v382
    %427 = vmatprep.subr.bf16.mxu0 0
    %428 = vmatpush1.bf16.msra.mxu0 %v383
    %429 = vmatprep.subr.bf16.mxu0 0
    %430 = vmatpush1.bf16.msra.mxu0 %v384
    %431 = vmatprep.subr.bf16.mxu0 0
    %432 = vmatpush1.bf16.msra.mxu0 %v385
    %433 = vmatprep.subr.bf16.mxu0 0
    %434 = vmatpush1.bf16.msra.mxu0 %v386
    %435 = vmatprep.mubr.bf16.mxu0 %v265
    %436 = vmatmul.mubr.bf16.gmra.mrb[0].mxu0 %v264
    %v437 = vpop.f32.mrb[0].mxu0
    %v438 = vadd.f32 %v305, %v437
    %v439 = vpop.f32.mrb[0].mxu0
    %v440 = vpop.f32.mrb[0].mxu0
    %v441 = vadd.f32 %v305, %v440
    %v442 = vpop.f32.mrb[0].mxu0
    %443 = vmatprep.mubr.bf16.mxu0 %v267
    %444 = vmatmul.mubr.bf16.gmra.mrb[0].mxu0 %v266
    %v445 = vpop.f32.mrb[0].mxu0
    %v446 = vadd.f32 %v305, %v445
    %v447 = vpop.f32.mrb[0].mxu0
    %v448 = vpop.f32.mrb[0].mxu0
    %v449 = vpop.f32.mrb[0].mxu0
    %450 = vdwg.mxu0
    %451 = vst [vmem:[#allocation11] sm:$0xff] %v438
    %452 = vst [vmem:[#allocation11 + $0x8] sm:$0xff] %v441
    %453 = vst [vmem:[#allocation11 + $0x10] sm:$0xff] %v446
    // Predicated region
    $region42: #{position_wise_ffn.1} parent=1 // pred_check
      _
    $region43: #{position_wise_ffn.1} parent=1 // pred_check_branch
      %455 = sbr.rel (0) target = $region45
    $region44: #{position_wise_ffn.1} parent=1 // pred_region
      %s457 = ssub.s32 384, 384
      %458 = vsyncadd [#allocation4], %s457
      %s459 = sshll.u32 [#allocation11], 4
      %s460 = int_to_ptr.vmem [resolvable:$true] %s459
      %465 = dma.vmem_to_hbm [thread:$0]  %s460, 384, %s5, [#allocation4], 128, 128, 8
    $region45: #{position_wise_ffn.1} parent=1 // pred_fallthru
      _
    // Predicated region
    $region46: #{position_wise_ffn.1} parent=1 // pred_check
      _
    $region47: #{position_wise_ffn.1} parent=1 // pred_check_branch
      %467 = sbr.rel (0) target = $region49
    $region48: #{position_wise_ffn.1} parent=1 // pred_region
      %468 = dma.done [#allocation4], 384
    $region49: #{position_wise_ffn.1} parent=1 // pred_fallthru
      _
    %469 = vsyncpa [#allocation3], 1
    %470 = vsyncpa [#allocation6], 1
    %471 = vsyncpa [#allocation9], 1
    %472 = vsyncpa [#allocation4], 1

</llo_original>
